<compile_context>
chip_gen: v7x
topology: tpu7x:2x2x1
jax: 0.10.0
libtpu: 0.0.40
codegen_flags: <defaults>
</compile_context>

<pallas_src>
import jax
import jax.numpy as jnp
from jax.experimental import pallas as pl
from jax.experimental.pallas import tpu as pltpu


def _round_up(x, m):
    return (x + m - 1) // m * m


def rnn_fused_kernel(
    xproj_ref,    # (T, B_pad, H_pad)   x_t @ W_ih^T + b_ih + b_hh, time-major, zero-padded
    whh_ref,      # (H_pad, H_pad)      W_hh^T, zero-padded rows & cols
    wlin_ref,     # (H_pad, O_pad)      W_lin^T, zero-padded
    blin_ref,     # (1, O_pad)          b_lin, zero-padded
    wsig_ref,     # (H_pad, O_pad)      W_sig^T, zero-padded
    bsig_ref,     # (1, O_pad)          b_sig, zero-padded
    core_ref,     # (T*B_pad, H_pad)    core_output, flat time-major rows
    lin_ref,      # (T*B_pad, O_pad)    linear readout
    sig_ref,      # (T*B_pad, O_pad)    sigmoid readout
    core_scratch, # VMEM (T*B_pad, H_pad)
):
    T, B, H = xproj_ref.shape  # padded sizes

    # Hoist recurrent weight load out of the unrolled loop.
    whh = whh_ref[...]

    # Serial recurrence: h_t = tanh(xproj_t + h_{t-1} @ W_hh^T), h_0 = 0.
    # Each step is one (B_pad, H_pad) x (H_pad, H_pad) MXU matmul; stores into the
    # flat scratch are (8, 128)-aligned (row offset is a multiple of 8).
    def step(t, h):
        h_new = jnp.tanh(
            xproj_ref[t] + jnp.dot(h, whh, preferred_element_type=jnp.float32)
        )
        row = pl.multiple_of(t * B, 8)
        core_scratch[pl.ds(row, B), :] = h_new
        return h_new

    jax.lax.fori_loop(0, T, step, jnp.zeros((B, H), jnp.float32), unroll=True)

    # Readouts: one matmul each over all T*B_pad rows, fully lane-dense stores.
    core_all = core_scratch[...]
    core_ref[...] = core_all
    lin_ref[...] = (
        jnp.dot(core_all, wlin_ref[...], preferred_element_type=jnp.float32)
        + blin_ref[...]
    )
    sig_ref[...] = jax.nn.sigmoid(
        jnp.dot(core_all, wsig_ref[...], preferred_element_type=jnp.float32)
        + bsig_ref[...]
    )


def recurrent_model_forward(x, params):
    """x: (B, T, I) float32. Returns dict matching RecurrentModel.forward."""
    B, T, I = x.shape
    H = params["W_hh"].shape[0]
    O = params["W_lin"].shape[0]

    B_pad = _round_up(B, 8)
    H_pad = _round_up(H, 128)
    O_pad = _round_up(O, 128)

    f32 = jnp.float32

    # Hoisted, non-recurrent input projection (one big matmul), time-major, padded.
    xproj = (
        jnp.einsum("bti,hi->tbh", x, params["W_ih"])
        + (params["b_ih"] + params["b_hh"])
    ).astype(f32)                                                    # (T, B, H)
    xproj = jnp.pad(xproj, ((0, 0), (0, B_pad - B), (0, H_pad - H)))  # (T, B_pad, H_pad)

    whh_pad = (
        jnp.zeros((H_pad, H_pad), f32).at[:H, :H].set(params["W_hh"].T.astype(f32))
    )
    wlin_pad = (
        jnp.zeros((H_pad, O_pad), f32).at[:H, :O].set(params["W_lin"].T.astype(f32))
    )
    blin_pad = jnp.zeros((1, O_pad), f32).at[0, :O].set(params["b_lin"].astype(f32))
    wsig_pad = (
        jnp.zeros((H_pad, O_pad), f32).at[:H, :O].set(params["W_sig"].T.astype(f32))
    )
    bsig_pad = jnp.zeros((1, O_pad), f32).at[0, :O].set(params["b_sig"].astype(f32))

    grid_spec = pltpu.PrefetchScalarGridSpec(
        num_scalar_prefetch=0,
        # Single invocation: recurrence + readout in one kernel. (For large padded
        # batches a "parallel" batch grid axis would use v7x's 2nd TensorCore.)
        grid=(1,),
        in_specs=[
            pl.BlockSpec((T, B_pad, H_pad), lambda i: (0, 0, 0)),
            pl.BlockSpec((H_pad, H_pad), lambda i: (0, 0)),
            pl.BlockSpec((H_pad, O_pad), lambda i: (0, 0)),
            pl.BlockSpec((1, O_pad), lambda i: (0, 0)),
            pl.BlockSpec((H_pad, O_pad), lambda i: (0, 0)),
            pl.BlockSpec((1, O_pad), lambda i: (0, 0)),
        ],
        out_specs=[
            pl.BlockSpec((T * B_pad, H_pad), lambda i: (0, 0)),
            pl.BlockSpec((T * B_pad, O_pad), lambda i: (0, 0)),
            pl.BlockSpec((T * B_pad, O_pad), lambda i: (0, 0)),
        ],
        scratch_shapes=[pltpu.VMEM((T * B_pad, H_pad), f32)],
    )

    core_flat, lin_flat, sig_flat = pl.pallas_call(
        rnn_fused_kernel,
        grid_spec=grid_spec,
        out_shape=(
            jax.ShapeDtypeStruct((T * B_pad, H_pad), f32),
            jax.ShapeDtypeStruct((T * B_pad, O_pad), f32),
            jax.ShapeDtypeStruct((T * B_pad, O_pad), f32),
        ),
        compiler_params=pltpu.CompilerParams(
            dimension_semantics=("arbitrary",),
        ),
    )(xproj, whh_pad, wlin_pad, blin_pad, wsig_pad, bsig_pad)

    # Unpad / reshape / go batch-major in the wrapper (free at these shapes;
    # contiguous HBM output, no in-kernel relayout).
    core = core_flat.reshape(T, B_pad, H_pad)[:, :B, :H].transpose(1, 0, 2)
    lin = lin_flat.reshape(T, B_pad, O_pad)[:, :B, :O].transpose(1, 0, 2)
    sig = sig_flat.reshape(T, B_pad, O_pad)[:, :B, :O].transpose(1, 0, 2)
    return dict(
        core_output=core,
        readout_output=lin,
        sigmoid_readout_output=sig,
    )


def reference_forward(x, params):
    """Pure-JAX reference (lax.scan) for correctness checking."""
    def cell(h, x_t):
        h_new = jnp.tanh(
            x_t @ params["W_ih"].T + params["b_ih"]
            + h @ params["W_hh"].T + params["b_hh"]
        )
        return h_new, h_new

    B = x.shape[0]
    H = params["W_hh"].shape[0]
    h0 = jnp.zeros((B, H), jnp.float32)
    _, core_tm = jax.lax.scan(cell, h0, jnp.transpose(x, (1, 0, 2)))
    core = jnp.transpose(core_tm, (1, 0, 2))
    lin = core @ params["W_lin"].T + params["b_lin"]
    sig = jax.nn.sigmoid(core @ params["W_sig"].T + params["b_sig"])
    return dict(core_output=core, readout_output=lin, sigmoid_readout_output=sig)


def init_params(key, input_size, hidden_size, output_size):
    ks = jax.random.split(key, 8)
    s_rnn = 1.0 / jnp.sqrt(hidden_size)
    s_ro = 1.0 / jnp.sqrt(hidden_size)
    u = lambda k, shape, s: jax.random.uniform(k, shape, jnp.float32, -s, s)
    return dict(
        W_ih=u(ks[0], (hidden_size, input_size), s_rnn),
        W_hh=u(ks[1], (hidden_size, hidden_size), s_rnn),
        b_ih=u(ks[2], (hidden_size,), s_rnn),
        b_hh=u(ks[3], (hidden_size,), s_rnn),
        W_lin=u(ks[4], (output_size, hidden_size), s_ro),
        b_lin=u(ks[5], (output_size,), s_ro),
        W_sig=u(ks[6], (output_size, hidden_size), s_ro),
        b_sig=u(ks[7], (output_size,), s_ro),
    )


if __name__ == "__main__":
    # Small shapes: batch=2, num_steps=8, input_size=4, hidden_size=32, output_size=3
    B, T, I, H, O = 2, 8, 4, 32, 3

    key = jax.random.PRNGKey(0)
    k_x, k_p = jax.random.split(key)
    x = jax.random.normal(k_x, (B, T, I), jnp.float32)
    params = init_params(k_p, I, H, O)

    out = recurrent_model_forward(x, params)
    jax.block_until_ready(out)

    ref = reference_forward(x, params)
    for name in ("core_output", "readout_output", "sigmoid_readout_output"):
        assert out[name].shape == ref[name].shape, name
        assert jnp.allclose(out[name], ref[name], atol=1e-5, rtol=1e-5), name

    print("KERNEL_OK")
</pallas_src>

<mosaic_0001>
module attributes {stable_mosaic.version = 11 : i64} {
  func.func @rnn_fused_kernel(%arg0: i32, %arg1: memref<8x8x128xf32, #tpu.memory_space<vmem>>, %arg2: memref<128x128xf32, #tpu.memory_space<vmem>>, %arg3: memref<128x128xf32, #tpu.memory_space<vmem>>, %arg4: memref<1x128xf32, #tpu.memory_space<vmem>>, %arg5: memref<128x128xf32, #tpu.memory_space<vmem>>, %arg6: memref<1x128xf32, #tpu.memory_space<vmem>>, %arg7: memref<64x128xf32, #tpu.memory_space<vmem>>, %arg8: memref<64x128xf32, #tpu.memory_space<vmem>>, %arg9: memref<64x128xf32, #tpu.memory_space<vmem>>, %arg10: memref<64x128xf32, #tpu.memory_space<vmem>>) attributes {dimension_semantics = [#tpu.dimension_semantics<arbitrary>], iteration_bounds = array<i64: 1>, scalar_prefetch = 0 : i64, scratch_operands = 1 : i64, tpu.core_type = #tpu.core_type<tc>, window_params = [{pipeline_mode = #tpu.pipeline_mode<synchronous>, transform_indices = @transform_0, window_bounds = array<i64: 8, 8, 128>}, {pipeline_mode = #tpu.pipeline_mode<synchronous>, transform_indices = @transform_1, window_bounds = array<i64: 128, 128>}, {pipeline_mode = #tpu.pipeline_mode<synchronous>, transform_indices = @transform_2, window_bounds = array<i64: 128, 128>}, {pipeline_mode = #tpu.pipeline_mode<synchronous>, transform_indices = @transform_3, window_bounds = array<i64: 1, 128>}, {pipeline_mode = #tpu.pipeline_mode<synchronous>, transform_indices = @transform_4, window_bounds = array<i64: 128, 128>}, {pipeline_mode = #tpu.pipeline_mode<synchronous>, transform_indices = @transform_5, window_bounds = array<i64: 1, 128>}, {pipeline_mode = #tpu.pipeline_mode<synchronous>, transform_indices = @transform_6, window_bounds = array<i64: 64, 128>}, {pipeline_mode = #tpu.pipeline_mode<synchronous>, transform_indices = @transform_7, window_bounds = array<i64: 64, 128>}, {pipeline_mode = #tpu.pipeline_mode<synchronous>, transform_indices = @transform_8, window_bounds = array<i64: 64, 128>}]} {
    %c0 = arith.constant 0 : index
    %c0_0 = arith.constant 0 : index
    %0 = vector.load %arg2[%c0, %c0_0] : memref<128x128xf32, #tpu.memory_space<vmem>>, vector<128x128xf32>
    %cst = arith.constant 0.000000e+00 : f32
    %1 = vector.broadcast %cst : f32 to vector<8x128xf32>
    %c0_i32 = arith.constant 0 : i32
    %2 = arith.index_cast %c0_i32 : i32 to index
    %c0_1 = arith.constant 0 : index
    %c0_2 = arith.constant 0 : index
    %3 = vector.load %arg1[%2, %c0_1, %c0_2] : memref<8x8x128xf32, #tpu.memory_space<vmem>>, vector<1x8x128xf32>
    %4 = vector.shape_cast %3 : vector<1x8x128xf32> to vector<8x128xf32>
    %cst_3 = arith.constant dense<0.000000e+00> : vector<8x128xf32>
    %5 = tpu.matmul %1, %0, %cst_3 {dimension_numbers = #tpu.dot_dimension_numbers<[1], [0], [0], [1], [0, 0, 1, 1], [], []>} : vector<8x128xf32>, vector<128x128xf32>, vector<8x128xf32> -> vector<8x128xf32>
    %6 = arith.addf %4, %5 : vector<8x128xf32>
    %7 = math.tanh %6 : vector<8x128xf32>
    %c8_i32 = arith.constant 8 : i32
    %8 = arith.muli %c0_i32, %c8_i32 : i32
    %9 = tpu.assume_multiple %8, 8 : i32
    %10 = arith.index_cast %9 : i32 to index
    %c0_4 = arith.constant 0 : index
    %11 = vector.load %arg10[%10, %c0_4] : memref<64x128xf32, #tpu.memory_space<vmem>>, vector<8x128xf32>
    tpu.vector_store %arg10[%10, %c0_4], %7 {strides = array<i32>} : memref<64x128xf32, #tpu.memory_space<vmem>>, vector<8x128xf32>,
    %c1_i32 = arith.constant 1 : i32
    %12 = arith.index_cast %c1_i32 : i32 to index
    %c0_5 = arith.constant 0 : index
    %c0_6 = arith.constant 0 : index
    %13 = vector.load %arg1[%12, %c0_5, %c0_6] : memref<8x8x128xf32, #tpu.memory_space<vmem>>, vector<1x8x128xf32>
    %14 = vector.shape_cast %13 : vector<1x8x128xf32> to vector<8x128xf32>
    %cst_7 = arith.constant dense<0.000000e+00> : vector<8x128xf32>
    %15 = tpu.matmul %7, %0, %cst_7 {dimension_numbers = #tpu.dot_dimension_numbers<[1], [0], [0], [1], [0, 0, 1, 1], [], []>} : vector<8x128xf32>, vector<128x128xf32>, vector<8x128xf32> -> vector<8x128xf32>
    %16 = arith.addf %14, %15 : vector<8x128xf32>
    %17 = math.tanh %16 : vector<8x128xf32>
    %c8_i32_8 = arith.constant 8 : i32
    %18 = arith.muli %c1_i32, %c8_i32_8 : i32
    %19 = tpu.assume_multiple %18, 8 : i32
    %20 = arith.index_cast %19 : i32 to index
    %c0_9 = arith.constant 0 : index
    %21 = vector.load %arg10[%20, %c0_9] : memref<64x128xf32, #tpu.memory_space<vmem>>, vector<8x128xf32>
    tpu.vector_store %arg10[%20, %c0_9], %17 {strides = array<i32>} : memref<64x128xf32, #tpu.memory_space<vmem>>, vector<8x128xf32>,
    %c2_i32 = arith.constant 2 : i32
    %22 = arith.index_cast %c2_i32 : i32 to index
    %c0_10 = arith.constant 0 : index
    %c0_11 = arith.constant 0 : index
    %23 = vector.load %arg1[%22, %c0_10, %c0_11] : memref<8x8x128xf32, #tpu.memory_space<vmem>>, vector<1x8x128xf32>
    %24 = vector.shape_cast %23 : vector<1x8x128xf32> to vector<8x128xf32>
    %cst_12 = arith.constant dense<0.000000e+00> : vector<8x128xf32>
    %25 = tpu.matmul %17, %0, %cst_12 {dimension_numbers = #tpu.dot_dimension_numbers<[1], [0], [0], [1], [0, 0, 1, 1], [], []>} : vector<8x128xf32>, vector<128x128xf32>, vector<8x128xf32> -> vector<8x128xf32>
    %26 = arith.addf %24, %25 : vector<8x128xf32>
    %27 = math.tanh %26 : vector<8x128xf32>
    %c8_i32_13 = arith.constant 8 : i32
    %28 = arith.muli %c2_i32, %c8_i32_13 : i32
    %29 = tpu.assume_multiple %28, 8 : i32
    %30 = arith.index_cast %29 : i32 to index
    %c0_14 = arith.constant 0 : index
    %31 = vector.load %arg10[%30, %c0_14] : memref<64x128xf32, #tpu.memory_space<vmem>>, vector<8x128xf32>
    tpu.vector_store %arg10[%30, %c0_14], %27 {strides = array<i32>} : memref<64x128xf32, #tpu.memory_space<vmem>>, vector<8x128xf32>,
    %c3_i32 = arith.constant 3 : i32
    %32 = arith.index_cast %c3_i32 : i32 to index
    %c0_15 = arith.constant 0 : index
    %c0_16 = arith.constant 0 : index
    %33 = vector.load %arg1[%32, %c0_15, %c0_16] : memref<8x8x128xf32, #tpu.memory_space<vmem>>, vector<1x8x128xf32>
    %34 = vector.shape_cast %33 : vector<1x8x128xf32> to vector<8x128xf32>
    %cst_17 = arith.constant dense<0.000000e+00> : vector<8x128xf32>
    %35 = tpu.matmul %27, %0, %cst_17 {dimension_numbers = #tpu.dot_dimension_numbers<[1], [0], [0], [1], [0, 0, 1, 1], [], []>} : vector<8x128xf32>, vector<128x128xf32>, vector<8x128xf32> -> vector<8x128xf32>
    %36 = arith.addf %34, %35 : vector<8x128xf32>
    %37 = math.tanh %36 : vector<8x128xf32>
    %c8_i32_18 = arith.constant 8 : i32
    %38 = arith.muli %c3_i32, %c8_i32_18 : i32
    %39 = tpu.assume_multiple %38, 8 : i32
    %40 = arith.index_cast %39 : i32 to index
    %c0_19 = arith.constant 0 : index
    %41 = vector.load %arg10[%40, %c0_19] : memref<64x128xf32, #tpu.memory_space<vmem>>, vector<8x128xf32>
    tpu.vector_store %arg10[%40, %c0_19], %37 {strides = array<i32>} : memref<64x128xf32, #tpu.memory_space<vmem>>, vector<8x128xf32>,
    %c4_i32 = arith.constant 4 : i32
    %42 = arith.index_cast %c4_i32 : i32 to index
    %c0_20 = arith.constant 0 : index
    %c0_21 = arith.constant 0 : index
    %43 = vector.load %arg1[%42, %c0_20, %c0_21] : memref<8x8x128xf32, #tpu.memory_space<vmem>>, vector<1x8x128xf32>
    %44 = vector.shape_cast %43 : vector<1x8x128xf32> to vector<8x128xf32>
    %cst_22 = arith.constant dense<0.000000e+00> : vector<8x128xf32>
    %45 = tpu.matmul %37, %0, %cst_22 {dimension_numbers = #tpu.dot_dimension_numbers<[1], [0], [0], [1], [0, 0, 1, 1], [], []>} : vector<8x128xf32>, vector<128x128xf32>, vector<8x128xf32> -> vector<8x128xf32>
    %46 = arith.addf %44, %45 : vector<8x128xf32>
    %47 = math.tanh %46 : vector<8x128xf32>
    %c8_i32_23 = arith.constant 8 : i32
    %48 = arith.muli %c4_i32, %c8_i32_23 : i32
    %49 = tpu.assume_multiple %48, 8 : i32
    %50 = arith.index_cast %49 : i32 to index
    %c0_24 = arith.constant 0 : index
    %51 = vector.load %arg10[%50, %c0_24] : memref<64x128xf32, #tpu.memory_space<vmem>>, vector<8x128xf32>
    tpu.vector_store %arg10[%50, %c0_24], %47 {strides = array<i32>} : memref<64x128xf32, #tpu.memory_space<vmem>>, vector<8x128xf32>,
    %c5_i32 = arith.constant 5 : i32
    %52 = arith.index_cast %c5_i32 : i32 to index
    %c0_25 = arith.constant 0 : index
    %c0_26 = arith.constant 0 : index
    %53 = vector.load %arg1[%52, %c0_25, %c0_26] : memref<8x8x128xf32, #tpu.memory_space<vmem>>, vector<1x8x128xf32>
    %54 = vector.shape_cast %53 : vector<1x8x128xf32> to vector<8x128xf32>
    %cst_27 = arith.constant dense<0.000000e+00> : vector<8x128xf32>
    %55 = tpu.matmul %47, %0, %cst_27 {dimension_numbers = #tpu.dot_dimension_numbers<[1], [0], [0], [1], [0, 0, 1, 1], [], []>} : vector<8x128xf32>, vector<128x128xf32>, vector<8x128xf32> -> vector<8x128xf32>
    %56 = arith.addf %54, %55 : vector<8x128xf32>
    %57 = math.tanh %56 : vector<8x128xf32>
    %c8_i32_28 = arith.constant 8 : i32
    %58 = arith.muli %c5_i32, %c8_i32_28 : i32
    %59 = tpu.assume_multiple %58, 8 : i32
    %60 = arith.index_cast %59 : i32 to index
    %c0_29 = arith.constant 0 : index
    %61 = vector.load %arg10[%60, %c0_29] : memref<64x128xf32, #tpu.memory_space<vmem>>, vector<8x128xf32>
    tpu.vector_store %arg10[%60, %c0_29], %57 {strides = array<i32>} : memref<64x128xf32, #tpu.memory_space<vmem>>, vector<8x128xf32>,
    %c6_i32 = arith.constant 6 : i32
    %62 = arith.index_cast %c6_i32 : i32 to index
    %c0_30 = arith.constant 0 : index
    %c0_31 = arith.constant 0 : index
    %63 = vector.load %arg1[%62, %c0_30, %c0_31] : memref<8x8x128xf32, #tpu.memory_space<vmem>>, vector<1x8x128xf32>
    %64 = vector.shape_cast %63 : vector<1x8x128xf32> to vector<8x128xf32>
    %cst_32 = arith.constant dense<0.000000e+00> : vector<8x128xf32>
    %65 = tpu.matmul %57, %0, %cst_32 {dimension_numbers = #tpu.dot_dimension_numbers<[1], [0], [0], [1], [0, 0, 1, 1], [], []>} : vector<8x128xf32>, vector<128x128xf32>, vector<8x128xf32> -> vector<8x128xf32>
    %66 = arith.addf %64, %65 : vector<8x128xf32>
    %67 = math.tanh %66 : vector<8x128xf32>
    %c8_i32_33 = arith.constant 8 : i32
    %68 = arith.muli %c6_i32, %c8_i32_33 : i32
    %69 = tpu.assume_multiple %68, 8 : i32
    %70 = arith.index_cast %69 : i32 to index
    %c0_34 = arith.constant 0 : index
    %71 = vector.load %arg10[%70, %c0_34] : memref<64x128xf32, #tpu.memory_space<vmem>>, vector<8x128xf32>
    tpu.vector_store %arg10[%70, %c0_34], %67 {strides = array<i32>} : memref<64x128xf32, #tpu.memory_space<vmem>>, vector<8x128xf32>,
    %c7_i32 = arith.constant 7 : i32
    %72 = arith.index_cast %c7_i32 : i32 to index
    %c0_35 = arith.constant 0 : index
    %c0_36 = arith.constant 0 : index
    %73 = vector.load %arg1[%72, %c0_35, %c0_36] : memref<8x8x128xf32, #tpu.memory_space<vmem>>, vector<1x8x128xf32>
    %74 = vector.shape_cast %73 : vector<1x8x128xf32> to vector<8x128xf32>
    %cst_37 = arith.constant dense<0.000000e+00> : vector<8x128xf32>
    %75 = tpu.matmul %67, %0, %cst_37 {dimension_numbers = #tpu.dot_dimension_numbers<[1], [0], [0], [1], [0, 0, 1, 1], [], []>} : vector<8x128xf32>, vector<128x128xf32>, vector<8x128xf32> -> vector<8x128xf32>
    %76 = arith.addf %74, %75 : vector<8x128xf32>
    %77 = math.tanh %76 : vector<8x128xf32>
    %c8_i32_38 = arith.constant 8 : i32
    %78 = arith.muli %c7_i32, %c8_i32_38 : i32
    %79 = tpu.assume_multiple %78, 8 : i32
    %80 = arith.index_cast %79 : i32 to index
    %c0_39 = arith.constant 0 : index
    %81 = vector.load %arg10[%80, %c0_39] : memref<64x128xf32, #tpu.memory_space<vmem>>, vector<8x128xf32>
    tpu.vector_store %arg10[%80, %c0_39], %77 {strides = array<i32>} : memref<64x128xf32, #tpu.memory_space<vmem>>, vector<8x128xf32>,
    %c8_i32_40 = arith.constant 8 : i32
    %c0_41 = arith.constant 0 : index
    %c0_42 = arith.constant 0 : index
    %82 = vector.load %arg10[%c0_41, %c0_42] : memref<64x128xf32, #tpu.memory_space<vmem>>, vector<64x128xf32>
    %c0_43 = arith.constant 0 : index
    %c0_44 = arith.constant 0 : index
    %83 = vector.load %arg7[%c0_43, %c0_44] : memref<64x128xf32, #tpu.memory_space<vmem>>, vector<64x128xf32>
    tpu.vector_store %arg7[%c0_43, %c0_44], %82 {strides = array<i32>} : memref<64x128xf32, #tpu.memory_space<vmem>>, vector<64x128xf32>,
    %c0_45 = arith.constant 0 : index
    %c0_46 = arith.constant 0 : index
    %84 = vector.load %arg3[%c0_45, %c0_46] : memref<128x128xf32, #tpu.memory_space<vmem>>, vector<128x128xf32>
    %cst_47 = arith.constant dense<0.000000e+00> : vector<64x128xf32>
    %85 = tpu.matmul %82, %84, %cst_47 {dimension_numbers = #tpu.dot_dimension_numbers<[1], [0], [0], [1], [0, 0, 1, 1], [], []>} : vector<64x128xf32>, vector<128x128xf32>, vector<64x128xf32> -> vector<64x128xf32>
    %c0_48 = arith.constant 0 : index
    %c0_49 = arith.constant 0 : index
    %86 = vector.load %arg4[%c0_48, %c0_49] : memref<1x128xf32, #tpu.memory_space<vmem>>, vector<1x128xf32>
    %87 = vector.broadcast %86 : vector<1x128xf32> to vector<64x128xf32>
    %88 = arith.addf %85, %87 : vector<64x128xf32>
    %c0_50 = arith.constant 0 : index
    %c0_51 = arith.constant 0 : index
    %89 = vector.load %arg8[%c0_50, %c0_51] : memref<64x128xf32, #tpu.memory_space<vmem>>, vector<64x128xf32>
    tpu.vector_store %arg8[%c0_50, %c0_51], %88 {strides = array<i32>} : memref<64x128xf32, #tpu.memory_space<vmem>>, vector<64x128xf32>,
    %c0_52 = arith.constant 0 : index
    %c0_53 = arith.constant 0 : index
    %90 = vector.load %arg5[%c0_52, %c0_53] : memref<128x128xf32, #tpu.memory_space<vmem>>, vector<128x128xf32>
    %cst_54 = arith.constant dense<0.000000e+00> : vector<64x128xf32>
    %91 = tpu.matmul %82, %90, %cst_54 {dimension_numbers = #tpu.dot_dimension_numbers<[1], [0], [0], [1], [0, 0, 1, 1], [], []>} : vector<64x128xf32>, vector<128x128xf32>, vector<64x128xf32> -> vector<64x128xf32>
    %c0_55 = arith.constant 0 : index
    %c0_56 = arith.constant 0 : index
    %92 = vector.load %arg6[%c0_55, %c0_56] : memref<1x128xf32, #tpu.memory_space<vmem>>, vector<1x128xf32>
    %93 = vector.broadcast %92 : vector<1x128xf32> to vector<64x128xf32>
    %94 = arith.addf %91, %93 : vector<64x128xf32>
    %95 = arith.negf %94 : vector<64x128xf32>
    %96 = math.exp %95 : vector<64x128xf32>
    %cst_57 = arith.constant 1.000000e+00 : f32
    %97 = vector.broadcast %cst_57 : f32 to vector<64x128xf32>
    %98 = arith.addf %97, %96 : vector<64x128xf32>
    %99 = arith.divf %97, %98 : vector<64x128xf32>
    %c0_58 = arith.constant 0 : index
    %c0_59 = arith.constant 0 : index
    %100 = vector.load %arg9[%c0_58, %c0_59] : memref<64x128xf32, #tpu.memory_space<vmem>>, vector<64x128xf32>
    tpu.vector_store %arg9[%c0_58, %c0_59], %99 {strides = array<i32>} : memref<64x128xf32, #tpu.memory_space<vmem>>, vector<64x128xf32>,
    return
  }
  func.func @transform_0(%arg0: i32) -> (i32, i32, i32) {
    %c0_i32 = arith.constant 0 : i32
    %c0_i32_0 = arith.constant 0 : i32
    %c0_i32_1 = arith.constant 0 : i32
    %c0_i32_2 = arith.constant 0 : i32
    return %c0_i32, %c0_i32_0, %c0_i32_1 : i32, i32, i32
  }
  func.func @transform_1(%arg0: i32) -> (i32, i32) {
    %c0_i32 = arith.constant 0 : i32
    %c0_i32_0 = arith.constant 0 : i32
    %c0_i32_1 = arith.constant 0 : i32
    return %c0_i32, %c0_i32_0 : i32, i32
  }
  func.func @transform_2(%arg0: i32) -> (i32, i32) {
    %c0_i32 = arith.constant 0 : i32
    %c0_i32_0 = arith.constant 0 : i32
    %c0_i32_1 = arith.constant 0 : i32
    return %c0_i32, %c0_i32_0 : i32, i32
  }
  func.func @transform_3(%arg0: i32) -> (i32, i32) {
    %c0_i32 = arith.constant 0 : i32
    %c0_i32_0 = arith.constant 0 : i32
    %c0_i32_1 = arith.constant 0 : i32
    return %c0_i32, %c0_i32_0 : i32, i32
  }
  func.func @transform_4(%arg0: i32) -> (i32, i32) {
    %c0_i32 = arith.constant 0 : i32
    %c0_i32_0 = arith.constant 0 : i32
    %c0_i32_1 = arith.constant 0 : i32
    return %c0_i32, %c0_i32_0 : i32, i32
  }
  func.func @transform_5(%arg0: i32) -> (i32, i32) {
    %c0_i32 = arith.constant 0 : i32
    %c0_i32_0 = arith.constant 0 : i32
    %c0_i32_1 = arith.constant 0 : i32
    return %c0_i32, %c0_i32_0 : i32, i32
  }
  func.func @transform_6(%arg0: i32) -> (i32, i32) {
    %c0_i32 = arith.constant 0 : i32
    %c0_i32_0 = arith.constant 0 : i32
    %c0_i32_1 = arith.constant 0 : i32
    return %c0_i32, %c0_i32_0 : i32, i32
  }
  func.func @transform_7(%arg0: i32) -> (i32, i32) {
    %c0_i32 = arith.constant 0 : i32
    %c0_i32_0 = arith.constant 0 : i32
    %c0_i32_1 = arith.constant 0 : i32
    return %c0_i32, %c0_i32_0 : i32, i32
  }
  func.func @transform_8(%arg0: i32) -> (i32, i32) {
    %c0_i32 = arith.constant 0 : i32
    %c0_i32_0 = arith.constant 0 : i32
    %c0_i32_1 = arith.constant 0 : i32
    return %c0_i32, %c0_i32_0 : i32, i32
  }
}

</mosaic_0001>

<llo_original>
// kernel: tpu_custom_call.1
$region0: #{tpu_custom_call.1}
  #allocation0 [shape = 'u32[]', space=smem, size = 0x4, offset = 0x4, fixed_abs, tag = 'smem constant byte address 0x4 - core index']
  #allocation1 [shape = 'u32[144,128]{1,0:T(1,128)}', space=vmem, size = 0x12000, scoped, tag = 'internal scratch']
  #allocation2 [shape = 'f32[64,128]{1,0:T(8,128)}', space=vmem, size = 0x8000, scoped, tag = 'scratch operand']
  %s0 = inlined_call_operand.hbm [shape: f32[8,8,128], index: 0, kind: input, shape index: {}]
  %s1 = inlined_call_operand.hbm [shape: f32[128,128], index: 1, kind: input, shape index: {}]
  %s2 = inlined_call_operand.hbm [shape: f32[128,128], index: 2, kind: input, shape index: {}]
  %s3 = inlined_call_operand.vmem [shape: f32[1,128], index: 3, kind: input, shape index: {}]
  %s4 = inlined_call_operand.hbm [shape: f32[128,128], index: 4, kind: input, shape index: {}]
  %s5 = inlined_call_operand.vmem [shape: f32[1,128], index: 5, kind: input, shape index: {}]
  %s6 = inlined_call_operand.hbm [shape: f32[64,128], index: 6, kind: output, shape index: {0}]
  %s7 = inlined_call_operand.hbm [shape: f32[64,128], index: 7, kind: output, shape index: {1}]
  %s8 = inlined_call_operand.hbm [shape: f32[64,128], index: 8, kind: output, shape index: {2}]
  %9 = xla_tuple %s6, %s7, %s8
  %s10 = sld [smem:[#allocation0]]
  $region66: #{tpu_custom_call.1} parent=0
    _
  %s12 = ssub.s32 1, %s10
  %s13 = scalar_select 0, %s12, %s10
  $region1: #{tpu_custom_call.1} parent=0
    #allocation3 [shape = 'u8[32768]{0}', space=vmem, size = 0x8000, scoped, tag = 'input window, operand 0, single buffered']
    #allocation4 [shape = 's32[1]{0}', space=sflag, size = 0x4, scoped, tag = 'scoped memory for tpu_custom_call.1']
    #allocation5 [shape = 's32[1]{0}', space=sflag, size = 0x4, scoped, tag = 'scoped memory for tpu_custom_call.1']
    #allocation6 [shape = 'u8[65536]{0}', space=vmem, size = 0x10000, scoped, tag = 'input window, operand 1, single buffered']
    #allocation7 [shape = 's32[1]{0}', space=sflag, size = 0x4, scoped, tag = 'scoped memory for tpu_custom_call.1']
    #allocation8 [shape = 'u8[65536]{0}', space=vmem, size = 0x10000, scoped, tag = 'input window, operand 2, single buffered']
    #allocation9 [shape = 'u8[65536]{0}', space=vmem, size = 0x10000, scoped, tag = 'input window, operand 4, single buffered']
    #allocation10 [shape = 's32[1]{0}', space=sflag, size = 0x4, scoped, tag = 'scoped memory for tpu_custom_call.1']
    #allocation11 [shape = 'u8[32768]{0}', space=vmem, size = 0x8000, scoped, tag = 'output window, operand 0, single buffered']
    #allocation12 [shape = 'u8[32768]{0}', space=vmem, size = 0x8000, scoped, tag = 'output window, operand 1, single buffered']
    #allocation13 [shape = 's32[1]{0}', space=sflag, size = 0x4, scoped, tag = 'scoped memory for tpu_custom_call.1']
    #allocation14 [shape = 'u8[32768]{0}', space=vmem, size = 0x8000, scoped, tag = 'output window, operand 2, single buffered']
    %14 = vsyncpa [#allocation4], 0
    %15 = vsyncpa [#allocation7], 0
    %16 = vsyncpa [#allocation10], 0
    %17 = vsyncpa [#allocation5], 0
    %18 = vsyncpa [#allocation13], 0
    // Predicated region
    $region2: #{tpu_custom_call.1} parent=1 // pred_check
      _
    $region3: #{tpu_custom_call.1} parent=1 // pred_check_branch
      %20 = sbr.rel (0) target = $region5
    $region4: #{tpu_custom_call.1} parent=1 // pred_region
      %s22 = ssub.s32 1024, 1024
      %23 = vsyncadd [#allocation4], %s22
      %s24 = sshll.u32 [#allocation3], 4
      %s25 = int_to_ptr.vmem [resolvable:$true] %s24
      %30 = dma.hbm_to_vmem [thread:$0]  %s0, 1024, %s25, [#allocation4], 128, 128, 8
    $region5: #{tpu_custom_call.1} parent=1 // pred_fallthru
      _
    // Predicated region
    $region6: #{tpu_custom_call.1} parent=1 // pred_check
      _
    $region7: #{tpu_custom_call.1} parent=1 // pred_check_branch
      %32 = sbr.rel (0) target = $region9
    $region8: #{tpu_custom_call.1} parent=1 // pred_region
      %s34 = ssub.s32 2048, 2048
      %35 = vsyncadd [#allocation7], %s34
      %s36 = sshll.u32 [#allocation6], 4
      %s37 = int_to_ptr.vmem [resolvable:$true] %s36
      %42 = dma.hbm_to_vmem [thread:$0]  %s1, 2048, %s37, [#allocation7], 128, 128, 8
    $region9: #{tpu_custom_call.1} parent=1 // pred_fallthru
      _
    // Predicated region
    $region10: #{tpu_custom_call.1} parent=1 // pred_check
      _
    $region11: #{tpu_custom_call.1} parent=1 // pred_check_branch
      %44 = sbr.rel (0) target = $region13
    $region12: #{tpu_custom_call.1} parent=1 // pred_region
      %s46 = ssub.s32 2048, 2048
      %47 = vsyncadd [#allocation7], %s46
      %s48 = sshll.u32 [#allocation8], 4
      %s49 = int_to_ptr.vmem [resolvable:$true] %s48
      %54 = dma.hbm_to_vmem [thread:$0]  %s2, 2048, %s49, [#allocation7], 128, 128, 8
    $region13: #{tpu_custom_call.1} parent=1 // pred_fallthru
      _
    // Predicated region
    $region14: #{tpu_custom_call.1} parent=1 // pred_check
      _
    $region15: #{tpu_custom_call.1} parent=1 // pred_check_branch
      %56 = sbr.rel (0) target = $region17
    $region16: #{tpu_custom_call.1} parent=1 // pred_region
      _
    $region17: #{tpu_custom_call.1} parent=1 // pred_fallthru
      _
    // Predicated region
    $region18: #{tpu_custom_call.1} parent=1 // pred_check
      _
    $region19: #{tpu_custom_call.1} parent=1 // pred_check_branch
      %58 = sbr.rel (0) target = $region21
    $region20: #{tpu_custom_call.1} parent=1 // pred_region
      %s60 = ssub.s32 2048, 2048
      %61 = vsyncadd [#allocation10], %s60
      %s62 = sshll.u32 [#allocation9], 4
      %s63 = int_to_ptr.vmem [resolvable:$true] %s62
      %68 = dma.hbm_to_vmem [thread:$0]  %s4, 2048, %s63, [#allocation10], 128, 128, 8
    $region21: #{tpu_custom_call.1} parent=1 // pred_fallthru
      _
    // Predicated region
    $region22: #{tpu_custom_call.1} parent=1 // pred_check
      _
    $region23: #{tpu_custom_call.1} parent=1 // pred_check_branch
      %70 = sbr.rel (0) target = $region25
    $region24: #{tpu_custom_call.1} parent=1 // pred_region
      _
    $region25: #{tpu_custom_call.1} parent=1 // pred_fallthru
      _
    // Predicated region
    $region26: #{tpu_custom_call.1} parent=1 // pred_check
      _
    $region27: #{tpu_custom_call.1} parent=1 // pred_check_branch
      %72 = sbr.rel (0) target = $region29
    $region28: #{tpu_custom_call.1} parent=1 // pred_region
      %73 = dma.done [#allocation4], 1024
    $region29: #{tpu_custom_call.1} parent=1 // pred_fallthru
      _
    // Predicated region
    $region30: #{tpu_custom_call.1} parent=1 // pred_check
      _
    $region31: #{tpu_custom_call.1} parent=1 // pred_check_branch
      %75 = sbr.rel (0) target = $region33
    $region32: #{tpu_custom_call.1} parent=1 // pred_region
      %76 = dma.done [#allocation7], 2048
    $region33: #{tpu_custom_call.1} parent=1 // pred_fallthru
      _
    // Predicated region
    $region34: #{tpu_custom_call.1} parent=1 // pred_check
      _
    $region35: #{tpu_custom_call.1} parent=1 // pred_check_branch
      %78 = sbr.rel (0) target = $region37
    $region36: #{tpu_custom_call.1} parent=1 // pred_region
      %79 = dma.done [#allocation7], 2048
    $region37: #{tpu_custom_call.1} parent=1 // pred_fallthru
      _
    // Predicated region
    $region38: #{tpu_custom_call.1} parent=1 // pred_check
      _
    $region39: #{tpu_custom_call.1} parent=1 // pred_check_branch
      %81 = sbr.rel (0) target = $region41
    $region40: #{tpu_custom_call.1} parent=1 // pred_region
      %82 = dma.done [#allocation10], 2048
    $region41: #{tpu_custom_call.1} parent=1 // pred_fallthru
      _
    %v83 = vld [vmem:[#allocation6] sm:$0xff]
    %v84 = vld [vmem:[#allocation6 + $0x8] sm:$0xff]
    %v85 = vld [vmem:[#allocation6 + $0x10] sm:$0xff]
    %v86 = vld [vmem:[#allocation6 + $0x18] sm:$0xff]
    %v87 = vld [vmem:[#allocation6 + $0x20] sm:$0xff]
    %v88 = vld [vmem:[#allocation6 + $0x28] sm:$0xff]
    %v89 = vld [vmem:[#allocation6 + $0x30] sm:$0xff]
    %v90 = vld [vmem:[#allocation6 + $0x38] sm:$0xff]
    %v91 = vld [vmem:[#allocation6 + $0x40] sm:$0xff]
    %v92 = vld [vmem:[#allocation6 + $0x48] sm:$0xff]
    %v93 = vld [vmem:[#allocation6 + $0x50] sm:$0xff]
    %v94 = vld [vmem:[#allocation6 + $0x58] sm:$0xff]
    %v95 = vld [vmem:[#allocation6 + $0x60] sm:$0xff]
    %v96 = vld [vmem:[#allocation6 + $0x68] sm:$0xff]
    %v97 = vld [vmem:[#allocation6 + $0x70] sm:$0xff]
    %v98 = vld [vmem:[#allocation6 + $0x78] sm:$0xff]
    %v99 = vld [vmem:[#allocation3] sm:$0xff]
    %100 = vmatprep.subr.mxu0 0.0
    %101 = vmatpush1.msra.mxu0 %v83
    %102 = vmatprep.subr.mxu0 0.0
    %103 = vmatpush1.msra.mxu0 %v84
    %104 = vmatprep.subr.mxu0 0.0
    %105 = vmatpush1.msra.mxu0 %v85
    %106 = vmatprep.subr.mxu0 0.0
    %107 = vmatpush1.msra.mxu0 %v86
    %108 = vmatprep.subr.mxu0 0.0
    %109 = vmatpush1.msra.mxu0 %v87
    %110 = vmatprep.subr.mxu0 0.0
    %111 = vmatpush1.msra.mxu0 %v88
    %112 = vmatprep.subr.mxu0 0.0
    %113 = vmatpush1.msra.mxu0 %v89
    %114 = vmatprep.subr.mxu0 0.0
    %115 = vmatpush1.msra.mxu0 %v90
    %116 = vmatprep.subr.mxu0 0.0
    %117 = vmatpush1.msra.mxu0 %v91
    %118 = vmatprep.subr.mxu0 0.0
    %119 = vmatpush1.msra.mxu0 %v92
    %120 = vmatprep.subr.mxu0 0.0
    %121 = vmatpush1.msra.mxu0 %v93
    %122 = vmatprep.subr.mxu0 0.0
    %123 = vmatpush1.msra.mxu0 %v94
    %124 = vmatprep.subr.mxu0 0.0
    %125 = vmatpush1.msra.mxu0 %v95
    %126 = vmatprep.subr.mxu0 0.0
    %127 = vmatpush1.msra.mxu0 %v96
    %128 = vmatprep.subr.mxu0 0.0
    %129 = vmatpush1.msra.mxu0 %v97
    %130 = vmatprep.subr.mxu0 0.0
    %131 = vmatpush1.msra.mxu0 %v98
    %132 = vmatprep.subr.mxu0 0.0
    %133 = vmatpush1.msra.mxu0 0.0
    %134 = vmatprep.subr.mxu0 0.0
    %135 = vmatpush1.msra.mxu0 0.0
    %136 = vmatprep.subr.mxu0 0.0
    %137 = vmatpush1.msra.mxu0 0.0
    %138 = vmatprep.subr.mxu0 0.0
    %139 = vmatpush1.msra.mxu0 0.0
    %140 = vmatprep.subr.mxu0 0.0
    %141 = vmatpush1.msra.mxu0 0.0
    %142 = vmatprep.subr.mxu0 0.0
    %143 = vmatpush1.msra.mxu0 0.0
    %144 = vmatprep.subr.mxu0 0.0
    %145 = vmatpush1.msra.mxu0 0.0
    %146 = vmatprep.subr.mxu0 0.0
    %147 = vmatpush1.msra.mxu0 0.0
    %148 = vmatprep.subr.mxu0 0.0
    %149 = vmatpush1.msra.mxu0 0.0
    %150 = vmatprep.subr.mxu0 0.0
    %151 = vmatpush1.msra.mxu0 0.0
    %152 = vmatprep.subr.mxu0 0.0
    %153 = vmatpush1.msra.mxu0 0.0
    %154 = vmatprep.subr.mxu0 0.0
    %155 = vmatpush1.msra.mxu0 0.0
    %156 = vmatprep.subr.mxu0 0.0
    %157 = vmatpush1.msra.mxu0 0.0
    %158 = vmatprep.subr.mxu0 0.0
    %159 = vmatpush1.msra.mxu0 0.0
    %160 = vmatprep.subr.mxu0 0.0
    %161 = vmatpush1.msra.mxu0 0.0
    %162 = vmatprep.subr.mxu0 0.0
    %163 = vmatpush1.msra.mxu0 0.0
    %164 = vmatprep.mubr.f32.mxu0 0.0
    %165 = vmatmul.mubr.f32.gmra.mrb[0].mxu0 0.0
    %v166 = vpop.f32.mrb[0].mxu0
    %v167 = vadd.f32 0.0, %v166
    %v168 = vpop.f32.mrb[0].mxu0
    %169 = vdwg.mxu0
    %v170 = vadd.f32 %v99, %v167
    %v171 = vtanh.pop %v170
    %172 = vst [vmem:[#allocation2] sm:$0xff] %v171
    %s173 = scalar_lea.vmem [#allocation3], 8
    %v174 = vld [vmem:[%s173] sm:$0xff]
    %175 = vmatprep.subr.mxu0 0.0
    %176 = vmatpush1.msra.mxu0 %v83
    %177 = vmatprep.subr.mxu0 0.0
    %178 = vmatpush1.msra.mxu0 %v84
    %179 = vmatprep.subr.mxu0 0.0
    %180 = vmatpush1.msra.mxu0 %v85
    %181 = vmatprep.subr.mxu0 0.0
    %182 = vmatpush1.msra.mxu0 %v86
    %183 = vmatprep.subr.mxu0 0.0
    %184 = vmatpush1.msra.mxu0 %v87
    %185 = vmatprep.subr.mxu0 0.0
    %186 = vmatpush1.msra.mxu0 %v88
    %187 = vmatprep.subr.mxu0 0.0
    %188 = vmatpush1.msra.mxu0 %v89
    %189 = vmatprep.subr.mxu0 0.0
    %190 = vmatpush1.msra.mxu0 %v90
    %191 = vmatprep.subr.mxu0 0.0
    %192 = vmatpush1.msra.mxu0 %v91
    %193 = vmatprep.subr.mxu0 0.0
    %194 = vmatpush1.msra.mxu0 %v92
    %195 = vmatprep.subr.mxu0 0.0
    %196 = vmatpush1.msra.mxu0 %v93
    %197 = vmatprep.subr.mxu0 0.0
    %198 = vmatpush1.msra.mxu0 %v94
    %199 = vmatprep.subr.mxu0 0.0
    %200 = vmatpush1.msra.mxu0 %v95
    %201 = vmatprep.subr.mxu0 0.0
    %202 = vmatpush1.msra.mxu0 %v96
    %203 = vmatprep.subr.mxu0 0.0
    %204 = vmatpush1.msra.mxu0 %v97
    %205 = vmatprep.subr.mxu0 0.0
    %206 = vmatpush1.msra.mxu0 %v98
    %207 = vmatprep.subr.mxu0 0.0
    %208 = vmatpush1.msra.mxu0 0.0
    %209 = vmatprep.subr.mxu0 0.0
    %210 = vmatpush1.msra.mxu0 0.0
    %211 = vmatprep.subr.mxu0 0.0
    %212 = vmatpush1.msra.mxu0 0.0
    %213 = vmatprep.subr.mxu0 0.0
    %214 = vmatpush1.msra.mxu0 0.0
    %215 = vmatprep.subr.mxu0 0.0
    %216 = vmatpush1.msra.mxu0 0.0
    %217 = vmatprep.subr.mxu0 0.0
    %218 = vmatpush1.msra.mxu0 0.0
    %219 = vmatprep.subr.mxu0 0.0
    %220 = vmatpush1.msra.mxu0 0.0
    %221 = vmatprep.subr.mxu0 0.0
    %222 = vmatpush1.msra.mxu0 0.0
    %223 = vmatprep.subr.mxu0 0.0
    %224 = vmatpush1.msra.mxu0 0.0
    %225 = vmatprep.subr.mxu0 0.0
    %226 = vmatpush1.msra.mxu0 0.0
    %227 = vmatprep.subr.mxu0 0.0
    %228 = vmatpush1.msra.mxu0 0.0
    %229 = vmatprep.subr.mxu0 0.0
    %230 = vmatpush1.msra.mxu0 0.0
    %231 = vmatprep.subr.mxu0 0.0
    %232 = vmatpush1.msra.mxu0 0.0
    %233 = vmatprep.subr.mxu0 0.0
    %234 = vmatpush1.msra.mxu0 0.0
    %235 = vmatprep.subr.mxu0 0.0
    %236 = vmatpush1.msra.mxu0 0.0
    %237 = vmatprep.subr.mxu0 0.0
    %238 = vmatpush1.msra.mxu0 0.0
    %239 = vmatprep.mubr.f32.mxu0 0.0
    %240 = vmatmul.mubr.f32.gmra.mrb[0].mxu0 %v171
    %v241 = vpop.f32.mrb[0].mxu0
    %v242 = vadd.f32 0.0, %v241
    %v243 = vpop.f32.mrb[0].mxu0
    %244 = vdwg.mxu0
    %v245 = vadd.f32 %v174, %v242
    %v246 = vtanh.pop %v245
    %s247 = scalar_lea.vmem [#allocation2], 8
    %248 = vst [vmem:[%s247] sm:$0xff] %v246
    %s249 = scalar_lea.vmem [#allocation3], 16
    %v250 = vld [vmem:[%s249] sm:$0xff]
    %251 = vmatprep.subr.mxu0 0.0
    %252 = vmatpush1.msra.mxu0 %v83
    %253 = vmatprep.subr.mxu0 0.0
    %254 = vmatpush1.msra.mxu0 %v84
    %255 = vmatprep.subr.mxu0 0.0
    %256 = vmatpush1.msra.mxu0 %v85
    %257 = vmatprep.subr.mxu0 0.0
    %258 = vmatpush1.msra.mxu0 %v86
    %259 = vmatprep.subr.mxu0 0.0
    %260 = vmatpush1.msra.mxu0 %v87
    %261 = vmatprep.subr.mxu0 0.0
    %262 = vmatpush1.msra.mxu0 %v88
    %263 = vmatprep.subr.mxu0 0.0
    %264 = vmatpush1.msra.mxu0 %v89
    %265 = vmatprep.subr.mxu0 0.0
    %266 = vmatpush1.msra.mxu0 %v90
    %267 = vmatprep.subr.mxu0 0.0
    %268 = vmatpush1.msra.mxu0 %v91
    %269 = vmatprep.subr.mxu0 0.0
    %270 = vmatpush1.msra.mxu0 %v92
    %271 = vmatprep.subr.mxu0 0.0
    %272 = vmatpush1.msra.mxu0 %v93
    %273 = vmatprep.subr.mxu0 0.0
    %274 = vmatpush1.msra.mxu0 %v94
    %275 = vmatprep.subr.mxu0 0.0
    %276 = vmatpush1.msra.mxu0 %v95
    %277 = vmatprep.subr.mxu0 0.0
    %278 = vmatpush1.msra.mxu0 %v96
    %279 = vmatprep.subr.mxu0 0.0
    %280 = vmatpush1.msra.mxu0 %v97
    %281 = vmatprep.subr.mxu0 0.0
    %282 = vmatpush1.msra.mxu0 %v98
    %283 = vmatprep.subr.mxu0 0.0
    %284 = vmatpush1.msra.mxu0 0.0
    %285 = vmatprep.subr.mxu0 0.0
    %286 = vmatpush1.msra.mxu0 0.0
    %287 = vmatprep.subr.mxu0 0.0
    %288 = vmatpush1.msra.mxu0 0.0
    %289 = vmatprep.subr.mxu0 0.0
    %290 = vmatpush1.msra.mxu0 0.0
    %291 = vmatprep.subr.mxu0 0.0
    %292 = vmatpush1.msra.mxu0 0.0
    %293 = vmatprep.subr.mxu0 0.0
    %294 = vmatpush1.msra.mxu0 0.0
    %295 = vmatprep.subr.mxu0 0.0
    %296 = vmatpush1.msra.mxu0 0.0
    %297 = vmatprep.subr.mxu0 0.0
    %298 = vmatpush1.msra.mxu0 0.0
    %299 = vmatprep.subr.mxu0 0.0
    %300 = vmatpush1.msra.mxu0 0.0
    %301 = vmatprep.subr.mxu0 0.0
    %302 = vmatpush1.msra.mxu0 0.0
    %303 = vmatprep.subr.mxu0 0.0
    %304 = vmatpush1.msra.mxu0 0.0
    %305 = vmatprep.subr.mxu0 0.0
    %306 = vmatpush1.msra.mxu0 0.0
    %307 = vmatprep.subr.mxu0 0.0
    %308 = vmatpush1.msra.mxu0 0.0
    %309 = vmatprep.subr.mxu0 0.0
    %310 = vmatpush1.msra.mxu0 0.0
    %311 = vmatprep.subr.mxu0 0.0
    %312 = vmatpush1.msra.mxu0 0.0
    %313 = vmatprep.subr.mxu0 0.0
    %314 = vmatpush1.msra.mxu0 0.0
    %315 = vmatprep.mubr.f32.mxu0 0.0
    %316 = vmatmul.mubr.f32.gmra.mrb[0].mxu0 %v246
    %v317 = vpop.f32.mrb[0].mxu0
    %v318 = vadd.f32 0.0, %v317
    %v319 = vpop.f32.mrb[0].mxu0
    %320 = vdwg.mxu0
    %v321 = vadd.f32 %v250, %v318
    %v322 = vtanh.pop %v321
    %s323 = scalar_lea.vmem [#allocation2], 16
    %324 = vst [vmem:[%s323] sm:$0xff] %v322
    %s325 = scalar_lea.vmem [#allocation3], 24
    %v326 = vld [vmem:[%s325] sm:$0xff]
    %327 = vmatprep.subr.mxu0 0.0
    %328 = vmatpush1.msra.mxu0 %v83
    %329 = vmatprep.subr.mxu0 0.0
    %330 = vmatpush1.msra.mxu0 %v84
    %331 = vmatprep.subr.mxu0 0.0
    %332 = vmatpush1.msra.mxu0 %v85
    %333 = vmatprep.subr.mxu0 0.0
    %334 = vmatpush1.msra.mxu0 %v86
    %335 = vmatprep.subr.mxu0 0.0
    %336 = vmatpush1.msra.mxu0 %v87
    %337 = vmatprep.subr.mxu0 0.0
    %338 = vmatpush1.msra.mxu0 %v88
    %339 = vmatprep.subr.mxu0 0.0
    %340 = vmatpush1.msra.mxu0 %v89
    %341 = vmatprep.subr.mxu0 0.0
    %342 = vmatpush1.msra.mxu0 %v90
    %343 = vmatprep.subr.mxu0 0.0
    %344 = vmatpush1.msra.mxu0 %v91
    %345 = vmatprep.subr.mxu0 0.0
    %346 = vmatpush1.msra.mxu0 %v92
    %347 = vmatprep.subr.mxu0 0.0
    %348 = vmatpush1.msra.mxu0 %v93
    %349 = vmatprep.subr.mxu0 0.0
    %350 = vmatpush1.msra.mxu0 %v94
    %351 = vmatprep.subr.mxu0 0.0
    %352 = vmatpush1.msra.mxu0 %v95
    %353 = vmatprep.subr.mxu0 0.0
    %354 = vmatpush1.msra.mxu0 %v96
    %355 = vmatprep.subr.mxu0 0.0
    %356 = vmatpush1.msra.mxu0 %v97
    %357 = vmatprep.subr.mxu0 0.0
    %358 = vmatpush1.msra.mxu0 %v98
    %359 = vmatprep.subr.mxu0 0.0
    %360 = vmatpush1.msra.mxu0 0.0
    %361 = vmatprep.subr.mxu0 0.0
    %362 = vmatpush1.msra.mxu0 0.0
    %363 = vmatprep.subr.mxu0 0.0
    %364 = vmatpush1.msra.mxu0 0.0
    %365 = vmatprep.subr.mxu0 0.0
    %366 = vmatpush1.msra.mxu0 0.0
    %367 = vmatprep.subr.mxu0 0.0
    %368 = vmatpush1.msra.mxu0 0.0
    %369 = vmatprep.subr.mxu0 0.0
    %370 = vmatpush1.msra.mxu0 0.0
    %371 = vmatprep.subr.mxu0 0.0
    %372 = vmatpush1.msra.mxu0 0.0
    %373 = vmatprep.subr.mxu0 0.0
    %374 = vmatpush1.msra.mxu0 0.0
    %375 = vmatprep.subr.mxu0 0.0
    %376 = vmatpush1.msra.mxu0 0.0
    %377 = vmatprep.subr.mxu0 0.0
    %378 = vmatpush1.msra.mxu0 0.0
    %379 = vmatprep.subr.mxu0 0.0
    %380 = vmatpush1.msra.mxu0 0.0
    %381 = vmatprep.subr.mxu0 0.0
    %382 = vmatpush1.msra.mxu0 0.0
    %383 = vmatprep.subr.mxu0 0.0
    %384 = vmatpush1.msra.mxu0 0.0
    %385 = vmatprep.subr.mxu0 0.0
    %386 = vmatpush1.msra.mxu0 0.0
    %387 = vmatprep.subr.mxu0 0.0
    %388 = vmatpush1.msra.mxu0 0.0
    %389 = vmatprep.subr.mxu0 0.0
    %390 = vmatpush1.msra.mxu0 0.0
    %391 = vmatprep.mubr.f32.mxu0 0.0
    %392 = vmatmul.mubr.f32.gmra.mrb[0].mxu0 %v322
    %v393 = vpop.f32.mrb[0].mxu0
    %v394 = vadd.f32 0.0, %v393
    %v395 = vpop.f32.mrb[0].mxu0
    %396 = vdwg.mxu0
    %v397 = vadd.f32 %v326, %v394
    %v398 = vtanh.pop %v397
    %s399 = scalar_lea.vmem [#allocation2], 24
    %400 = vst [vmem:[%s399] sm:$0xff] %v398
    %s401 = scalar_lea.vmem [#allocation3], 32
    %v402 = vld [vmem:[%s401] sm:$0xff]
    %403 = vmatprep.subr.mxu0 0.0
    %404 = vmatpush1.msra.mxu0 %v83
    %405 = vmatprep.subr.mxu0 0.0
    %406 = vmatpush1.msra.mxu0 %v84
    %407 = vmatprep.subr.mxu0 0.0
    %408 = vmatpush1.msra.mxu0 %v85
    %409 = vmatprep.subr.mxu0 0.0
    %410 = vmatpush1.msra.mxu0 %v86
    %411 = vmatprep.subr.mxu0 0.0
    %412 = vmatpush1.msra.mxu0 %v87
    %413 = vmatprep.subr.mxu0 0.0
    %414 = vmatpush1.msra.mxu0 %v88
    %415 = vmatprep.subr.mxu0 0.0
    %416 = vmatpush1.msra.mxu0 %v89
    %417 = vmatprep.subr.mxu0 0.0
    %418 = vmatpush1.msra.mxu0 %v90
    %419 = vmatprep.subr.mxu0 0.0
    %420 = vmatpush1.msra.mxu0 %v91
    %421 = vmatprep.subr.mxu0 0.0
    %422 = vmatpush1.msra.mxu0 %v92
    %423 = vmatprep.subr.mxu0 0.0
    %424 = vmatpush1.msra.mxu0 %v93
    %425 = vmatprep.subr.mxu0 0.0
    %426 = vmatpush1.msra.mxu0 %v94
    %427 = vmatprep.subr.mxu0 0.0
    %428 = vmatpush1.msra.mxu0 %v95
    %429 = vmatprep.subr.mxu0 0.0
    %430 = vmatpush1.msra.mxu0 %v96
    %431 = vmatprep.subr.mxu0 0.0
    %432 = vmatpush1.msra.mxu0 %v97
    %433 = vmatprep.subr.mxu0 0.0
    %434 = vmatpush1.msra.mxu0 %v98
    %435 = vmatprep.subr.mxu0 0.0
    %436 = vmatpush1.msra.mxu0 0.0
    %437 = vmatprep.subr.mxu0 0.0
    %438 = vmatpush1.msra.mxu0 0.0
    %439 = vmatprep.subr.mxu0 0.0
    %440 = vmatpush1.msra.mxu0 0.0
    %441 = vmatprep.subr.mxu0 0.0
    %442 = vmatpush1.msra.mxu0 0.0
    %443 = vmatprep.subr.mxu0 0.0
    %444 = vmatpush1.msra.mxu0 0.0
    %445 = vmatprep.subr.mxu0 0.0
    %446 = vmatpush1.msra.mxu0 0.0
    %447 = vmatprep.subr.mxu0 0.0
    %448 = vmatpush1.msra.mxu0 0.0
    %449 = vmatprep.subr.mxu0 0.0
    %450 = vmatpush1.msra.mxu0 0.0
    %451 = vmatprep.subr.mxu0 0.0
    %452 = vmatpush1.msra.mxu0 0.0
    %453 = vmatprep.subr.mxu0 0.0
    %454 = vmatpush1.msra.mxu0 0.0
    %455 = vmatprep.subr.mxu0 0.0
    %456 = vmatpush1.msra.mxu0 0.0
    %457 = vmatprep.subr.mxu0 0.0
    %458 = vmatpush1.msra.mxu0 0.0
    %459 = vmatprep.subr.mxu0 0.0
    %460 = vmatpush1.msra.mxu0 0.0
    %461 = vmatprep.subr.mxu0 0.0
    %462 = vmatpush1.msra.mxu0 0.0
    %463 = vmatprep.subr.mxu0 0.0
    %464 = vmatpush1.msra.mxu0 0.0
    %465 = vmatprep.subr.mxu0 0.0
    %466 = vmatpush1.msra.mxu0 0.0
    %467 = vmatprep.mubr.f32.mxu0 0.0
    %468 = vmatmul.mubr.f32.gmra.mrb[0].mxu0 %v398
    %v469 = vpop.f32.mrb[0].mxu0
    %v470 = vadd.f32 0.0, %v469
    %v471 = vpop.f32.mrb[0].mxu0
    %472 = vdwg.mxu0
    %v473 = vadd.f32 %v402, %v470
    %v474 = vtanh.pop %v473
    %s475 = scalar_lea.vmem [#allocation2], 32
    %476 = vst [vmem:[%s475] sm:$0xff] %v474
    %s477 = scalar_lea.vmem [#allocation3], 40
    %v478 = vld [vmem:[%s477] sm:$0xff]
    %479 = vmatprep.subr.mxu0 0.0
    %480 = vmatpush1.msra.mxu0 %v83
    %481 = vmatprep.subr.mxu0 0.0
    %482 = vmatpush1.msra.mxu0 %v84
    %483 = vmatprep.subr.mxu0 0.0
    %484 = vmatpush1.msra.mxu0 %v85
    %485 = vmatprep.subr.mxu0 0.0
    %486 = vmatpush1.msra.mxu0 %v86
    %487 = vmatprep.subr.mxu0 0.0
    %488 = vmatpush1.msra.mxu0 %v87
    %489 = vmatprep.subr.mxu0 0.0
    %490 = vmatpush1.msra.mxu0 %v88
    %491 = vmatprep.subr.mxu0 0.0
    %492 = vmatpush1.msra.mxu0 %v89
    %493 = vmatprep.subr.mxu0 0.0
    %494 = vmatpush1.msra.mxu0 %v90
    %495 = vmatprep.subr.mxu0 0.0
    %496 = vmatpush1.msra.mxu0 %v91
    %497 = vmatprep.subr.mxu0 0.0
    %498 = vmatpush1.msra.mxu0 %v92
    %499 = vmatprep.subr.mxu0 0.0
    %500 = vmatpush1.msra.mxu0 %v93
    %501 = vmatprep.subr.mxu0 0.0
    %502 = vmatpush1.msra.mxu0 %v94
    %503 = vmatprep.subr.mxu0 0.0
    %504 = vmatpush1.msra.mxu0 %v95
    %505 = vmatprep.subr.mxu0 0.0
    %506 = vmatpush1.msra.mxu0 %v96
    %507 = vmatprep.subr.mxu0 0.0
    %508 = vmatpush1.msra.mxu0 %v97
    %509 = vmatprep.subr.mxu0 0.0
    %510 = vmatpush1.msra.mxu0 %v98
    %511 = vmatprep.subr.mxu0 0.0
    %512 = vmatpush1.msra.mxu0 0.0
    %513 = vmatprep.subr.mxu0 0.0
    %514 = vmatpush1.msra.mxu0 0.0
    %515 = vmatprep.subr.mxu0 0.0
    %516 = vmatpush1.msra.mxu0 0.0
    %517 = vmatprep.subr.mxu0 0.0
    %518 = vmatpush1.msra.mxu0 0.0
    %519 = vmatprep.subr.mxu0 0.0
    %520 = vmatpush1.msra.mxu0 0.0
    %521 = vmatprep.subr.mxu0 0.0
    %522 = vmatpush1.msra.mxu0 0.0
    %523 = vmatprep.subr.mxu0 0.0
    %524 = vmatpush1.msra.mxu0 0.0
    %525 = vmatprep.subr.mxu0 0.0
    %526 = vmatpush1.msra.mxu0 0.0
    %527 = vmatprep.subr.mxu0 0.0
    %528 = vmatpush1.msra.mxu0 0.0
    %529 = vmatprep.subr.mxu0 0.0
    %530 = vmatpush1.msra.mxu0 0.0
    %531 = vmatprep.subr.mxu0 0.0
    %532 = vmatpush1.msra.mxu0 0.0
    %533 = vmatprep.subr.mxu0 0.0
    %534 = vmatpush1.msra.mxu0 0.0
    %535 = vmatprep.subr.mxu0 0.0
    %536 = vmatpush1.msra.mxu0 0.0
    %537 = vmatprep.subr.mxu0 0.0
    %538 = vmatpush1.msra.mxu0 0.0
    %539 = vmatprep.subr.mxu0 0.0
    %540 = vmatpush1.msra.mxu0 0.0
    %541 = vmatprep.subr.mxu0 0.0
    %542 = vmatpush1.msra.mxu0 0.0
    %543 = vmatprep.mubr.f32.mxu0 0.0
    %544 = vmatmul.mubr.f32.gmra.mrb[0].mxu0 %v474
    %v545 = vpop.f32.mrb[0].mxu0
    %v546 = vadd.f32 0.0, %v545
    %v547 = vpop.f32.mrb[0].mxu0
    %548 = vdwg.mxu0
    %v549 = vadd.f32 %v478, %v546
    %v550 = vtanh.pop %v549
    %s551 = scalar_lea.vmem [#allocation2], 40
    %552 = vst [vmem:[%s551] sm:$0xff] %v550
    %s553 = scalar_lea.vmem [#allocation3], 48
    %v554 = vld [vmem:[%s553] sm:$0xff]
    %555 = vmatprep.subr.mxu0 0.0
    %556 = vmatpush1.msra.mxu0 %v83
    %557 = vmatprep.subr.mxu0 0.0
    %558 = vmatpush1.msra.mxu0 %v84
    %559 = vmatprep.subr.mxu0 0.0
    %560 = vmatpush1.msra.mxu0 %v85
    %561 = vmatprep.subr.mxu0 0.0
    %562 = vmatpush1.msra.mxu0 %v86
    %563 = vmatprep.subr.mxu0 0.0
    %564 = vmatpush1.msra.mxu0 %v87
    %565 = vmatprep.subr.mxu0 0.0
    %566 = vmatpush1.msra.mxu0 %v88
    %567 = vmatprep.subr.mxu0 0.0
    %568 = vmatpush1.msra.mxu0 %v89
    %569 = vmatprep.subr.mxu0 0.0
    %570 = vmatpush1.msra.mxu0 %v90
    %571 = vmatprep.subr.mxu0 0.0
    %572 = vmatpush1.msra.mxu0 %v91
    %573 = vmatprep.subr.mxu0 0.0
    %574 = vmatpush1.msra.mxu0 %v92
    %575 = vmatprep.subr.mxu0 0.0
    %576 = vmatpush1.msra.mxu0 %v93
    %577 = vmatprep.subr.mxu0 0.0
    %578 = vmatpush1.msra.mxu0 %v94
    %579 = vmatprep.subr.mxu0 0.0
    %580 = vmatpush1.msra.mxu0 %v95
    %581 = vmatprep.subr.mxu0 0.0
    %582 = vmatpush1.msra.mxu0 %v96
    %583 = vmatprep.subr.mxu0 0.0
    %584 = vmatpush1.msra.mxu0 %v97
    %585 = vmatprep.subr.mxu0 0.0
    %586 = vmatpush1.msra.mxu0 %v98
    %587 = vmatprep.subr.mxu0 0.0
    %588 = vmatpush1.msra.mxu0 0.0
    %589 = vmatprep.subr.mxu0 0.0
    %590 = vmatpush1.msra.mxu0 0.0
    %591 = vmatprep.subr.mxu0 0.0
    %592 = vmatpush1.msra.mxu0 0.0
    %593 = vmatprep.subr.mxu0 0.0
    %594 = vmatpush1.msra.mxu0 0.0
    %595 = vmatprep.subr.mxu0 0.0
    %596 = vmatpush1.msra.mxu0 0.0
    %597 = vmatprep.subr.mxu0 0.0
    %598 = vmatpush1.msra.mxu0 0.0
    %599 = vmatprep.subr.mxu0 0.0
    %600 = vmatpush1.msra.mxu0 0.0
    %601 = vmatprep.subr.mxu0 0.0
    %602 = vmatpush1.msra.mxu0 0.0
    %603 = vmatprep.subr.mxu0 0.0
    %604 = vmatpush1.msra.mxu0 0.0
    %605 = vmatprep.subr.mxu0 0.0
    %606 = vmatpush1.msra.mxu0 0.0
    %607 = vmatprep.subr.mxu0 0.0
    %608 = vmatpush1.msra.mxu0 0.0
    %609 = vmatprep.subr.mxu0 0.0
    %610 = vmatpush1.msra.mxu0 0.0
    %611 = vmatprep.subr.mxu0 0.0
    %612 = vmatpush1.msra.mxu0 0.0
    %613 = vmatprep.subr.mxu0 0.0
    %614 = vmatpush1.msra.mxu0 0.0
    %615 = vmatprep.subr.mxu0 0.0
    %616 = vmatpush1.msra.mxu0 0.0
    %617 = vmatprep.subr.mxu0 0.0
    %618 = vmatpush1.msra.mxu0 0.0
    %619 = vmatprep.mubr.f32.mxu0 0.0
    %620 = vmatmul.mubr.f32.gmra.mrb[0].mxu0 %v550
    %v621 = vpop.f32.mrb[0].mxu0
    %v622 = vadd.f32 0.0, %v621
    %v623 = vpop.f32.mrb[0].mxu0
    %624 = vdwg.mxu0
    %v625 = vadd.f32 %v554, %v622
    %v626 = vtanh.pop %v625
    %s627 = scalar_lea.vmem [#allocation2], 48
    %628 = vst [vmem:[%s627] sm:$0xff] %v626
    %s629 = scalar_lea.vmem [#allocation3], 56
    %v630 = vld [vmem:[%s629] sm:$0xff]
    %631 = vmatprep.subr.mxu0 0.0
    %632 = vmatpush1.msra.mxu0 %v83
    %633 = vmatprep.subr.mxu0 0.0
    %634 = vmatpush1.msra.mxu0 %v84
    %635 = vmatprep.subr.mxu0 0.0
    %636 = vmatpush1.msra.mxu0 %v85
    %637 = vmatprep.subr.mxu0 0.0
    %638 = vmatpush1.msra.mxu0 %v86
    %639 = vmatprep.subr.mxu0 0.0
    %640 = vmatpush1.msra.mxu0 %v87
    %641 = vmatprep.subr.mxu0 0.0
    %642 = vmatpush1.msra.mxu0 %v88
    %643 = vmatprep.subr.mxu0 0.0
    %644 = vmatpush1.msra.mxu0 %v89
    %645 = vmatprep.subr.mxu0 0.0
    %646 = vmatpush1.msra.mxu0 %v90
    %647 = vmatprep.subr.mxu0 0.0
    %648 = vmatpush1.msra.mxu0 %v91
    %649 = vmatprep.subr.mxu0 0.0
    %650 = vmatpush1.msra.mxu0 %v92
    %651 = vmatprep.subr.mxu0 0.0
    %652 = vmatpush1.msra.mxu0 %v93
    %653 = vmatprep.subr.mxu0 0.0
    %654 = vmatpush1.msra.mxu0 %v94
    %655 = vmatprep.subr.mxu0 0.0
    %656 = vmatpush1.msra.mxu0 %v95
    %657 = vmatprep.subr.mxu0 0.0
    %658 = vmatpush1.msra.mxu0 %v96
    %659 = vmatprep.subr.mxu0 0.0
    %660 = vmatpush1.msra.mxu0 %v97
    %661 = vmatprep.subr.mxu0 0.0
    %662 = vmatpush1.msra.mxu0 %v98
    %663 = vmatprep.subr.mxu0 0.0
    %664 = vmatpush1.msra.mxu0 0.0
    %665 = vmatprep.subr.mxu0 0.0
    %666 = vmatpush1.msra.mxu0 0.0
    %667 = vmatprep.subr.mxu0 0.0
    %668 = vmatpush1.msra.mxu0 0.0
    %669 = vmatprep.subr.mxu0 0.0
    %670 = vmatpush1.msra.mxu0 0.0
    %671 = vmatprep.subr.mxu0 0.0
    %672 = vmatpush1.msra.mxu0 0.0
    %673 = vmatprep.subr.mxu0 0.0
    %674 = vmatpush1.msra.mxu0 0.0
    %675 = vmatprep.subr.mxu0 0.0
    %676 = vmatpush1.msra.mxu0 0.0
    %677 = vmatprep.subr.mxu0 0.0
    %678 = vmatpush1.msra.mxu0 0.0
    %679 = vmatprep.subr.mxu0 0.0
    %680 = vmatpush1.msra.mxu0 0.0
    %681 = vmatprep.subr.mxu0 0.0
    %682 = vmatpush1.msra.mxu0 0.0
    %683 = vmatprep.subr.mxu0 0.0
    %684 = vmatpush1.msra.mxu0 0.0
    %685 = vmatprep.subr.mxu0 0.0
    %686 = vmatpush1.msra.mxu0 0.0
    %687 = vmatprep.subr.mxu0 0.0
    %688 = vmatpush1.msra.mxu0 0.0
    %689 = vmatprep.subr.mxu0 0.0
    %690 = vmatpush1.msra.mxu0 0.0
    %691 = vmatprep.subr.mxu0 0.0
    %692 = vmatpush1.msra.mxu0 0.0
    %693 = vmatprep.subr.mxu0 0.0
    %694 = vmatpush1.msra.mxu0 0.0
    %695 = vmatprep.mubr.f32.mxu0 0.0
    %696 = vmatmul.mubr.f32.gmra.mrb[0].mxu0 %v626
    %v697 = vpop.f32.mrb[0].mxu0
    %v698 = vadd.f32 0.0, %v697
    %v699 = vpop.f32.mrb[0].mxu0
    %700 = vdwg.mxu0
    %v701 = vadd.f32 %v630, %v698
    %v702 = vtanh.pop %v701
    %s703 = scalar_lea.vmem [#allocation2], 56
    %704 = vst [vmem:[%s703] sm:$0xff] %v702
    %v705 = vld [vmem:[#allocation2] sm:$0xff]
    %v706 = vld [vmem:[#allocation2 + $0x8] sm:$0xff]
    %v707 = vld [vmem:[#allocation2 + $0x10] sm:$0xff]
    %v708 = vld [vmem:[#allocation2 + $0x18] sm:$0xff]
    %v709 = vld [vmem:[#allocation2 + $0x20] sm:$0xff]
    %v710 = vld [vmem:[#allocation2 + $0x28] sm:$0xff]
    %v711 = vld [vmem:[#allocation2 + $0x30] sm:$0xff]
    %v712 = vld [vmem:[#allocation2 + $0x38] sm:$0xff]
    %713 = vst [vmem:[#allocation11] sm:$0xff] %v705
    %714 = vst [vmem:[#allocation11 + $0x8] sm:$0xff] %v706
    %715 = vst [vmem:[#allocation11 + $0x10] sm:$0xff] %v707
    %716 = vst [vmem:[#allocation11 + $0x18] sm:$0xff] %v708
    %717 = vst [vmem:[#allocation11 + $0x20] sm:$0xff] %v709
    %718 = vst [vmem:[#allocation11 + $0x28] sm:$0xff] %v710
    %719 = vst [vmem:[#allocation11 + $0x30] sm:$0xff] %v711
    %720 = vst [vmem:[#allocation11 + $0x38] sm:$0xff] %v712
    %v721 = vld [vmem:[#allocation8] sm:$0xff]
    %v722 = vld [vmem:[#allocation8 + $0x8] sm:$0xff]
    %v723 = vld [vmem:[#allocation8 + $0x10] sm:$0xff]
    %v724 = vld [vmem:[#allocation8 + $0x18] sm:$0xff]
    %v725 = vld [vmem:[#allocation8 + $0x20] sm:$0xff]
    %v726 = vld [vmem:[#allocation8 + $0x28] sm:$0xff]
    %v727 = vld [vmem:[#allocation8 + $0x30] sm:$0xff]
    %v728 = vld [vmem:[#allocation8 + $0x38] sm:$0xff]
    %v729 = vld [vmem:[#allocation8 + $0x40] sm:$0xff]
    %v730 = vld [vmem:[#allocation8 + $0x48] sm:$0xff]
    %v731 = vld [vmem:[#allocation8 + $0x50] sm:$0xff]
    %v732 = vld [vmem:[#allocation8 + $0x58] sm:$0xff]
    %v733 = vld [vmem:[#allocation8 + $0x60] sm:$0xff]
    %v734 = vld [vmem:[#allocation8 + $0x68] sm:$0xff]
    %v735 = vld [vmem:[#allocation8 + $0x70] sm:$0xff]
    %v736 = vld [vmem:[#allocation8 + $0x78] sm:$0xff]
    %v737 = vld [vmem:[%s3] sm:$0x1]
    %v739 = vlaneseq
    %v740 = vshrl.u32 %v739, 7
    %v741 = vsub.s32 0, %v740
    %v742 = vrot.slane %v737, %v741
    %744 = vmatprep.subr.mxu0 0.0
    %745 = vmatpush1.msra.mxu0 %v721
    %746 = vmatprep.subr.mxu0 0.0
    %747 = vmatpush1.msra.mxu0 %v722
    %748 = vmatprep.subr.mxu0 0.0
    %749 = vmatpush1.msra.mxu0 %v723
    %750 = vmatprep.subr.mxu0 0.0
    %751 = vmatpush1.msra.mxu0 %v724
    %752 = vmatprep.subr.mxu0 0.0
    %753 = vmatpush1.msra.mxu0 %v725
    %754 = vmatprep.subr.mxu0 0.0
    %755 = vmatpush1.msra.mxu0 %v726
    %756 = vmatprep.subr.mxu0 0.0
    %757 = vmatpush1.msra.mxu0 %v727
    %758 = vmatprep.subr.mxu0 0.0
    %759 = vmatpush1.msra.mxu0 %v728
    %760 = vmatprep.subr.mxu0 0.0
    %761 = vmatpush1.msra.mxu0 %v729
    %762 = vmatprep.subr.mxu0 0.0
    %763 = vmatpush1.msra.mxu0 %v730
    %764 = vmatprep.subr.mxu0 0.0
    %765 = vmatpush1.msra.mxu0 %v731
    %766 = vmatprep.subr.mxu0 0.0
    %767 = vmatpush1.msra.mxu0 %v732
    %768 = vmatprep.subr.mxu0 0.0
    %769 = vmatpush1.msra.mxu0 %v733
    %770 = vmatprep.subr.mxu0 0.0
    %771 = vmatpush1.msra.mxu0 %v734
    %772 = vmatprep.subr.mxu0 0.0
    %773 = vmatpush1.msra.mxu0 %v735
    %774 = vmatprep.subr.mxu0 0.0
    %775 = vmatpush1.msra.mxu0 %v736
    %776 = vmatprep.subr.mxu0 0.0
    %777 = vmatpush1.msra.mxu0 0.0
    %778 = vmatprep.subr.mxu0 0.0
    %779 = vmatpush1.msra.mxu0 0.0
    %780 = vmatprep.subr.mxu0 0.0
    %781 = vmatpush1.msra.mxu0 0.0
    %782 = vmatprep.subr.mxu0 0.0
    %783 = vmatpush1.msra.mxu0 0.0
    %784 = vmatprep.subr.mxu0 0.0
    %785 = vmatpush1.msra.mxu0 0.0
    %786 = vmatprep.subr.mxu0 0.0
    %787 = vmatpush1.msra.mxu0 0.0
    %788 = vmatprep.subr.mxu0 0.0
    %789 = vmatpush1.msra.mxu0 0.0
    %790 = vmatprep.subr.mxu0 0.0
    %791 = vmatpush1.msra.mxu0 0.0
    %792 = vmatprep.subr.mxu0 0.0
    %793 = vmatpush1.msra.mxu0 0.0
    %794 = vmatprep.subr.mxu0 0.0
    %795 = vmatpush1.msra.mxu0 0.0
    %796 = vmatprep.subr.mxu0 0.0
    %797 = vmatpush1.msra.mxu0 0.0
    %798 = vmatprep.subr.mxu0 0.0
    %799 = vmatpush1.msra.mxu0 0.0
    %800 = vmatprep.subr.mxu0 0.0
    %801 = vmatpush1.msra.mxu0 0.0
    %802 = vmatprep.subr.mxu0 0.0
    %803 = vmatpush1.msra.mxu0 0.0
    %804 = vmatprep.subr.mxu0 0.0
    %805 = vmatpush1.msra.mxu0 0.0
    %806 = vmatprep.subr.mxu0 0.0
    %807 = vmatpush1.msra.mxu0 0.0
    %808 = vmatprep.mubr.f32.mxu0 0.0
    %809 = vmatmul.mubr.f32.gmra.mrb[0].mxu0 %v705
    %v810 = vpop.f32.mrb[0].mxu0
    %v811 = vadd.f32 %v742, %v810
    %v812 = vpop.f32.mrb[0].mxu0
    %813 = vmatprep.mubr.f32.mxu0 0.0
    %814 = vmatmul.mubr.f32.gmra.mrb[0].mxu0 %v706
    %v815 = vpop.f32.mrb[0].mxu0
    %v816 = vadd.f32 %v742, %v815
    %v817 = vpop.f32.mrb[0].mxu0
    %818 = vmatprep.mubr.f32.mxu0 0.0
    %819 = vmatmul.mubr.f32.gmra.mrb[0].mxu0 %v707
    %v820 = vpop.f32.mrb[0].mxu0
    %v821 = vadd.f32 %v742, %v820
    %v822 = vpop.f32.mrb[0].mxu0
    %823 = vmatprep.mubr.f32.mxu0 0.0
    %824 = vmatmul.mubr.f32.gmra.mrb[0].mxu0 %v708
    %v825 = vpop.f32.mrb[0].mxu0
    %v826 = vadd.f32 %v742, %v825
    %v827 = vpop.f32.mrb[0].mxu0
    %828 = vmatprep.mubr.f32.mxu0 0.0
    %829 = vmatmul.mubr.f32.gmra.mrb[0].mxu0 %v709
    %v830 = vpop.f32.mrb[0].mxu0
    %v831 = vadd.f32 %v742, %v830
    %v832 = vpop.f32.mrb[0].mxu0
    %833 = vmatprep.mubr.f32.mxu0 0.0
    %834 = vmatmul.mubr.f32.gmra.mrb[0].mxu0 %v710
    %v835 = vpop.f32.mrb[0].mxu0
    %v836 = vadd.f32 %v742, %v835
    %v837 = vpop.f32.mrb[0].mxu0
    %838 = vmatprep.mubr.f32.mxu0 0.0
    %839 = vmatmul.mubr.f32.gmra.mrb[0].mxu0 %v711
    %v840 = vpop.f32.mrb[0].mxu0
    %v841 = vadd.f32 %v742, %v840
    %v842 = vpop.f32.mrb[0].mxu0
    %843 = vmatprep.mubr.f32.mxu0 0.0
    %844 = vmatmul.mubr.f32.gmra.mrb[0].mxu0 %v712
    %v845 = vpop.f32.mrb[0].mxu0
    %v846 = vadd.f32 %v742, %v845
    %v847 = vpop.f32.mrb[0].mxu0
    %848 = vdwg.mxu0
    %849 = vst [vmem:[#allocation12] sm:$0xff] %v811
    %850 = vst [vmem:[#allocation12 + $0x8] sm:$0xff] %v816
    %851 = vst [vmem:[#allocation12 + $0x10] sm:$0xff] %v821
    %852 = vst [vmem:[#allocation12 + $0x18] sm:$0xff] %v826
    %853 = vst [vmem:[#allocation12 + $0x20] sm:$0xff] %v831
    %854 = vst [vmem:[#allocation12 + $0x28] sm:$0xff] %v836
    %855 = vst [vmem:[#allocation12 + $0x30] sm:$0xff] %v841
    %856 = vst [vmem:[#allocation12 + $0x38] sm:$0xff] %v846
    %v857 = vld [vmem:[#allocation9] sm:$0xff]
    %v858 = vld [vmem:[#allocation9 + $0x8] sm:$0xff]
    %v859 = vld [vmem:[#allocation9 + $0x10] sm:$0xff]
    %v860 = vld [vmem:[#allocation9 + $0x18] sm:$0xff]
    %v861 = vld [vmem:[#allocation9 + $0x20] sm:$0xff]
    %v862 = vld [vmem:[#allocation9 + $0x28] sm:$0xff]
    %v863 = vld [vmem:[#allocation9 + $0x30] sm:$0xff]
    %v864 = vld [vmem:[#allocation9 + $0x38] sm:$0xff]
    %v865 = vld [vmem:[#allocation9 + $0x40] sm:$0xff]
    %v866 = vld [vmem:[#allocation9 + $0x48] sm:$0xff]
    %v867 = vld [vmem:[#allocation9 + $0x50] sm:$0xff]
    %v868 = vld [vmem:[#allocation9 + $0x58] sm:$0xff]
    %v869 = vld [vmem:[#allocation9 + $0x60] sm:$0xff]
    %v870 = vld [vmem:[#allocation9 + $0x68] sm:$0xff]
    %v871 = vld [vmem:[#allocation9 + $0x70] sm:$0xff]
    %v872 = vld [vmem:[#allocation9 + $0x78] sm:$0xff]
    %v873 = vld [vmem:[%s5] sm:$0x1]
    %v875 = vlaneseq
    %v876 = vshrl.u32 %v875, 7
    %v877 = vsub.s32 0, %v876
    %v878 = vrot.slane %v873, %v877
    %880 = vmatprep.subr.mxu0 0.0
    %881 = vmatpush1.msra.mxu0 %v857
    %882 = vmatprep.subr.mxu0 0.0
    %883 = vmatpush1.msra.mxu0 %v858
    %884 = vmatprep.subr.mxu0 0.0
    %885 = vmatpush1.msra.mxu0 %v859
    %886 = vmatprep.subr.mxu0 0.0
    %887 = vmatpush1.msra.mxu0 %v860
    %888 = vmatprep.subr.mxu0 0.0
    %889 = vmatpush1.msra.mxu0 %v861
    %890 = vmatprep.subr.mxu0 0.0
    %891 = vmatpush1.msra.mxu0 %v862
    %892 = vmatprep.subr.mxu0 0.0
    %893 = vmatpush1.msra.mxu0 %v863
    %894 = vmatprep.subr.mxu0 0.0
    %895 = vmatpush1.msra.mxu0 %v864
    %896 = vmatprep.subr.mxu0 0.0
    %897 = vmatpush1.msra.mxu0 %v865
    %898 = vmatprep.subr.mxu0 0.0
    %899 = vmatpush1.msra.mxu0 %v866
    %900 = vmatprep.subr.mxu0 0.0
    %901 = vmatpush1.msra.mxu0 %v867
    %902 = vmatprep.subr.mxu0 0.0
    %903 = vmatpush1.msra.mxu0 %v868
    %904 = vmatprep.subr.mxu0 0.0
    %905 = vmatpush1.msra.mxu0 %v869
    %906 = vmatprep.subr.mxu0 0.0
    %907 = vmatpush1.msra.mxu0 %v870
    %908 = vmatprep.subr.mxu0 0.0
    %909 = vmatpush1.msra.mxu0 %v871
    %910 = vmatprep.subr.mxu0 0.0
    %911 = vmatpush1.msra.mxu0 %v872
    %912 = vmatprep.subr.mxu0 0.0
    %913 = vmatpush1.msra.mxu0 0.0
    %914 = vmatprep.subr.mxu0 0.0
    %915 = vmatpush1.msra.mxu0 0.0
    %916 = vmatprep.subr.mxu0 0.0
    %917 = vmatpush1.msra.mxu0 0.0
    %918 = vmatprep.subr.mxu0 0.0
    %919 = vmatpush1.msra.mxu0 0.0
    %920 = vmatprep.subr.mxu0 0.0
    %921 = vmatpush1.msra.mxu0 0.0
    %922 = vmatprep.subr.mxu0 0.0
    %923 = vmatpush1.msra.mxu0 0.0
    %924 = vmatprep.subr.mxu0 0.0
    %925 = vmatpush1.msra.mxu0 0.0
    %926 = vmatprep.subr.mxu0 0.0
    %927 = vmatpush1.msra.mxu0 0.0
    %928 = vmatprep.subr.mxu0 0.0
    %929 = vmatpush1.msra.mxu0 0.0
    %930 = vmatprep.subr.mxu0 0.0
    %931 = vmatpush1.msra.mxu0 0.0
    %932 = vmatprep.subr.mxu0 0.0
    %933 = vmatpush1.msra.mxu0 0.0
    %934 = vmatprep.subr.mxu0 0.0
    %935 = vmatpush1.msra.mxu0 0.0
    %936 = vmatprep.subr.mxu0 0.0
    %937 = vmatpush1.msra.mxu0 0.0
    %938 = vmatprep.subr.mxu0 0.0
    %939 = vmatpush1.msra.mxu0 0.0
    %940 = vmatprep.subr.mxu0 0.0
    %941 = vmatpush1.msra.mxu0 0.0
    %942 = vmatprep.subr.mxu0 0.0
    %943 = vmatpush1.msra.mxu0 0.0
    %944 = vmatprep.mubr.f32.mxu0 0.0
    %945 = vmatmul.mubr.f32.gmra.mrb[0].mxu0 %v705
    %v946 = vpop.f32.mrb[0].mxu0
    %v947 = vadd.f32 %v878, %v946
    %v948 = vpop.f32.mrb[0].mxu0
    %949 = vmatprep.mubr.f32.mxu0 0.0
    %950 = vmatmul.mubr.f32.gmra.mrb[0].mxu0 %v706
    %v951 = vpop.f32.mrb[0].mxu0
    %v952 = vadd.f32 %v878, %v951
    %v953 = vpop.f32.mrb[0].mxu0
    %954 = vmatprep.mubr.f32.mxu0 0.0
    %955 = vmatmul.mubr.f32.gmra.mrb[0].mxu0 %v707
    %v956 = vpop.f32.mrb[0].mxu0
    %v957 = vadd.f32 %v878, %v956
    %v958 = vpop.f32.mrb[0].mxu0
    %959 = vmatprep.mubr.f32.mxu0 0.0
    %960 = vmatmul.mubr.f32.gmra.mrb[0].mxu0 %v708
    %v961 = vpop.f32.mrb[0].mxu0
    %v962 = vadd.f32 %v878, %v961
    %v963 = vpop.f32.mrb[0].mxu0
    %964 = vmatprep.mubr.f32.mxu0 0.0
    %965 = vmatmul.mubr.f32.gmra.mrb[0].mxu0 %v709
    %v966 = vpop.f32.mrb[0].mxu0
    %v967 = vadd.f32 %v878, %v966
    %v968 = vpop.f32.mrb[0].mxu0
    %969 = vmatprep.mubr.f32.mxu0 0.0
    %970 = vmatmul.mubr.f32.gmra.mrb[0].mxu0 %v710
    %v971 = vpop.f32.mrb[0].mxu0
    %v972 = vadd.f32 %v878, %v971
    %v973 = vpop.f32.mrb[0].mxu0
    %974 = vmatprep.mubr.f32.mxu0 0.0
    %975 = vmatmul.mubr.f32.gmra.mrb[0].mxu0 %v711
    %v976 = vpop.f32.mrb[0].mxu0
    %v977 = vadd.f32 %v878, %v976
    %v978 = vpop.f32.mrb[0].mxu0
    %979 = vmatprep.mubr.f32.mxu0 0.0
    %980 = vmatmul.mubr.f32.gmra.mrb[0].mxu0 %v712
    %v981 = vpop.f32.mrb[0].mxu0
    %v982 = vadd.f32 %v878, %v981
    %v983 = vpop.f32.mrb[0].mxu0
    %984 = vdwg.mxu0
    %v985 = vxor.u32 %v947, 2147483648
    %v986 = vxor.u32 %v952, 2147483648
    %v987 = vxor.u32 %v957, 2147483648
    %v988 = vxor.u32 %v962, 2147483648
    %v989 = vxor.u32 %v967, 2147483648
    %v990 = vxor.u32 %v972, 2147483648
    %v991 = vxor.u32 %v977, 2147483648
    %v992 = vxor.u32 %v982, 2147483648
    %v993 = vmul.f32 %v985, 1.442695
    %v994 = vpow.pop %v993
    %v995 = vmul.f32 %v986, 1.442695
    %v996 = vpow.pop %v995
    %v997 = vmul.f32 %v987, 1.442695
    %v998 = vpow.pop %v997
    %v999 = vmul.f32 %v988, 1.442695
    %v1000 = vpow.pop %v999
    %v1001 = vmul.f32 %v989, 1.442695
    %v1002 = vpow.pop %v1001
    %v1003 = vmul.f32 %v990, 1.442695
    %v1004 = vpow.pop %v1003
    %v1005 = vmul.f32 %v991, 1.442695
    %v1006 = vpow.pop %v1005
    %v1007 = vmul.f32 %v992, 1.442695
    %v1008 = vpow.pop %v1007
    %v1009 = vadd.f32 %v994, 1.0
    %v1010 = vadd.f32 %v996, 1.0
    %v1011 = vadd.f32 %v998, 1.0
    %v1012 = vadd.f32 %v1000, 1.0
    %v1013 = vadd.f32 %v1002, 1.0
    %v1014 = vadd.f32 %v1004, 1.0
    %v1015 = vadd.f32 %v1006, 1.0
    %v1016 = vadd.f32 %v1008, 1.0
    %v1017 = vrcp.pop %v1009
    %v1018 = vmul.f32 1.0, %v1017
    %v1019 = vrcp.pop %v1010
    %v1020 = vmul.f32 1.0, %v1019
    %v1021 = vrcp.pop %v1011
    %v1022 = vmul.f32 1.0, %v1021
    %v1023 = vrcp.pop %v1012
    %v1024 = vmul.f32 1.0, %v1023
    %v1025 = vrcp.pop %v1013
    %v1026 = vmul.f32 1.0, %v1025
    %v1027 = vrcp.pop %v1014
    %v1028 = vmul.f32 1.0, %v1027
    %v1029 = vrcp.pop %v1015
    %v1030 = vmul.f32 1.0, %v1029
    %v1031 = vrcp.pop %v1016
    %v1032 = vmul.f32 1.0, %v1031
    %1033 = vst [vmem:[#allocation14] sm:$0xff] %v1018
    %1034 = vst [vmem:[#allocation14 + $0x8] sm:$0xff] %v1020
    %1035 = vst [vmem:[#allocation14 + $0x10] sm:$0xff] %v1022
    %1036 = vst [vmem:[#allocation14 + $0x18] sm:$0xff] %v1024
    %1037 = vst [vmem:[#allocation14 + $0x20] sm:$0xff] %v1026
    %1038 = vst [vmem:[#allocation14 + $0x28] sm:$0xff] %v1028
    %1039 = vst [vmem:[#allocation14 + $0x30] sm:$0xff] %v1030
    %1040 = vst [vmem:[#allocation14 + $0x38] sm:$0xff] %v1032
    // Predicated region
    $region42: #{tpu_custom_call.1} parent=1 // pred_check
      _
    $region43: #{tpu_custom_call.1} parent=1 // pred_check_branch
      %1042 = sbr.rel (0) target = $region45
    $region44: #{tpu_custom_call.1} parent=1 // pred_region
      %s1044 = ssub.s32 1024, 1024
      %1045 = vsyncadd [#allocation5], %s1044
      %s1046 = sshll.u32 [#allocation11], 4
      %s1047 = int_to_ptr.vmem [resolvable:$true] %s1046
      %1052 = dma.vmem_to_hbm [thread:$0]  %s1047, 1024, %s6, [#allocation5], 128, 128, 8
    $region45: #{tpu_custom_call.1} parent=1 // pred_fallthru
      _
    // Predicated region
    $region46: #{tpu_custom_call.1} parent=1 // pred_check
      _
    $region47: #{tpu_custom_call.1} parent=1 // pred_check_branch
      %1054 = sbr.rel (0) target = $region49
    $region48: #{tpu_custom_call.1} parent=1 // pred_region
      %s1056 = ssub.s32 1024, 1024
      %1057 = vsyncadd [#allocation13], %s1056
      %s1058 = sshll.u32 [#allocation12], 4
      %s1059 = int_to_ptr.vmem [resolvable:$true] %s1058
      %1064 = dma.vmem_to_hbm [thread:$0]  %s1059, 1024, %s7, [#allocation13], 128, 128, 8
    $region49: #{tpu_custom_call.1} parent=1 // pred_fallthru
      _
    // Predicated region
    $region50: #{tpu_custom_call.1} parent=1 // pred_check
      _
    $region51: #{tpu_custom_call.1} parent=1 // pred_check_branch
      %1066 = sbr.rel (0) target = $region53
    $region52: #{tpu_custom_call.1} parent=1 // pred_region
      %s1068 = ssub.s32 1024, 1024
      %1069 = vsyncadd [#allocation13], %s1068
      %s1070 = sshll.u32 [#allocation14], 4
      %s1071 = int_to_ptr.vmem [resolvable:$true] %s1070
      %1076 = dma.vmem_to_hbm [thread:$0]  %s1071, 1024, %s8, [#allocation13], 128, 128, 8
    $region53: #{tpu_custom_call.1} parent=1 // pred_fallthru
      _
    // Predicated region
    $region54: #{tpu_custom_call.1} parent=1 // pred_check
      _
    $region55: #{tpu_custom_call.1} parent=1 // pred_check_branch
      %1078 = sbr.rel (0) target = $region57
    $region56: #{tpu_custom_call.1} parent=1 // pred_region
      %1079 = dma.done [#allocation5], 1024
    $region57: #{tpu_custom_call.1} parent=1 // pred_fallthru
      _
    // Predicated region
    $region58: #{tpu_custom_call.1} parent=1 // pred_check
      _
    $region59: #{tpu_custom_call.1} parent=1 // pred_check_branch
      %1081 = sbr.rel (0) target = $region61
    $region60: #{tpu_custom_call.1} parent=1 // pred_region
      %1082 = dma.done [#allocation13], 1024
    $region61: #{tpu_custom_call.1} parent=1 // pred_fallthru
      _
    // Predicated region
    $region62: #{tpu_custom_call.1} parent=1 // pred_check
      _
    $region63: #{tpu_custom_call.1} parent=1 // pred_check_branch
      %1084 = sbr.rel (0) target = $region65
    $region64: #{tpu_custom_call.1} parent=1 // pred_region
      %1085 = dma.done [#allocation13], 1024
    $region65: #{tpu_custom_call.1} parent=1 // pred_fallthru
      _
    %1086 = vsyncpa [#allocation4], 1
    %1087 = vsyncpa [#allocation7], 1
    %1088 = vsyncpa [#allocation10], 1
    %1089 = vsyncpa [#allocation5], 1
    %1090 = vsyncpa [#allocation13], 1

</llo_original>
